<compile_context>
chip_gen: v5e
topology: v5e:2x2
jax: 0.10.0
libtpu: 0.0.40
codegen_flags: <defaults>
</compile_context>

<pallas_src>
import jax
import jax.numpy as jnp
from jax.experimental import pallas as pl
from jax.experimental.pallas import tpu as pltpu


def _hbm_copy_kernel(x_hbm, o_hbm, sem):
    # One whole-array HBM->HBM DMA. No VMEM round-trip, no per-tile grid
    # overhead; the DMA engine moves the bytes at HBM bandwidth.
    cp = pltpu.make_async_copy(x_hbm, o_hbm, sem)
    cp.start()
    cp.wait()


def _materialize_copy(flat: jax.Array) -> jax.Array:
    """Materialize an already-flattened (N, feat) array into a fresh buffer
    via a single HBM->HBM DMA inside a Pallas kernel."""
    n, feat = flat.shape
    itemsize = jnp.dtype(flat.dtype).itemsize
    cost = pl.CostEstimate(
        flops=0,
        transcendentals=0,
        bytes_accessed=2 * n * feat * itemsize,
    )
    return pl.pallas_call(
        _hbm_copy_kernel,
        out_shape=jax.ShapeDtypeStruct((n, feat), flat.dtype),
        in_specs=[pl.BlockSpec(memory_space=pl.ANY)],
        out_specs=pl.BlockSpec(memory_space=pl.ANY),
        scratch_shapes=[pltpu.SemaphoreType.DMA],
        cost_estimate=cost,
    )(flat)


def flatten_transformer_forward(bounds: jax.Array, *, materialize: bool = False) -> jax.Array:
    """Pallas equivalent of FlattenTransformer.forward(bounds) = bounds.flatten(1).

    Accepts any rank >= 2 input (like torch.flatten(x, 1)); all non-batch dims
    are flattened row-major into a single feature axis.

    By default this is a free, metadata-only reshape (no kernel, no HBM
    traffic). Pass `materialize=True` only if a physically separate output
    buffer is required; that path runs a single HBM->HBM DMA Pallas kernel.
    """
    if bounds.ndim < 2:
        raise ValueError("FlattenTransformer expects rank >= 2 input")
    n = bounds.shape[0]
    feat = 1
    for d in bounds.shape[1:]:
        feat *= d

    # Free, metadata-only flatten (== torch.flatten(x, 1)).
    flat = jnp.reshape(bounds, (n, feat))
    if not materialize:
        return flat
    return _materialize_copy(flat)


if __name__ == "__main__":
    key = jax.random.PRNGKey(0)
    # Small NCHW bounds tensor, consistent with the conv-net activations this
    # module sits after in the verifier.
    x = jax.random.normal(key, (2, 4, 16, 16), dtype=jnp.float32)

    ref = x.reshape(x.shape[0], -1)

    # Default (zero-cost) path.
    out_free = flatten_transformer_forward(x)
    out_free = jax.block_until_ready(out_free)
    assert out_free.shape == (2, 4 * 16 * 16), out_free.shape
    assert out_free.dtype == x.dtype
    assert jnp.array_equal(out_free, ref), "flatten (free path) mismatch vs reference"

    # Materialize path: exercises the Pallas HBM->HBM DMA kernel once.
    out_copy = flatten_transformer_forward(x, materialize=True)
    out_copy = jax.block_until_ready(out_copy)
    assert out_copy.shape == (2, 4 * 16 * 16), out_copy.shape
    assert out_copy.dtype == x.dtype
    assert jnp.array_equal(out_copy, ref), "flatten (Pallas DMA path) mismatch vs reference"

    print("KERNEL_OK")
</pallas_src>

<mosaic_0001>
module attributes {stable_mosaic.version = 11 : i64} {
  func.func @_hbm_copy_kernel(%arg0: memref<2x1024xf32, #tpu.memory_space<any>>, %arg1: memref<2x1024xf32, #tpu.memory_space<any>>, %arg2: memref<!tpu.dma_semaphore, #tpu.memory_space<semaphore_mem>>) attributes {dimension_semantics = [], scalar_prefetch = 0 : i64, scratch_operands = 1 : i64, tpu.core_type = #tpu.core_type<tc>} {
    tpu.enqueue_dma source(%arg0 : memref<2x1024xf32, #tpu.memory_space<any>>) target(%arg1 : memref<2x1024xf32, #tpu.memory_space<any>>) target_semaphore(%arg2 : memref<!tpu.dma_semaphore, #tpu.memory_space<semaphore_mem>>)
    tpu.wait_dma2 semaphore(%arg2 : memref<!tpu.dma_semaphore, #tpu.memory_space<semaphore_mem>>) src(%arg0 : memref<2x1024xf32, #tpu.memory_space<any>>) dst(%arg1 : memref<2x1024xf32, #tpu.memory_space<any>>)
    return
  }
}

</mosaic_0001>

<llo_original>
// kernel: tpu_custom_call.1
$region0: #{tpu_custom_call.1}
  #allocation0 [shape = 'u32[]', space=smem, size = 0x4, offset = 0x4, fixed_abs, tag = 'smem constant byte address 0x4 - core index']
  #allocation1 [shape = 'u32[72,128]{1,0:T(1,128)}', space=vmem, size = 0x9000, scoped, tag = 'internal scratch']
  #allocation2 [shape = 's32[1]{0}', space=sflag, size = 0x4, scoped, tag = 'scratch operand']
  #allocation3 [shape = 's32[]', space=sflag, size = 0x4, offset = 0, fixed_abs, tag = 'sflag constant byte address 0x0 - dummy sync flag']
  #allocation4 [shape = 'u32[0]{0}', space=smem, size = 0, offset = 0, fixed_abs, tag = 'smem constant byte address 0x0 - null']
  %s0 = inlined_call_operand.hbm [shape: f32[2,1024], index: 0, kind: input, shape index: {}]
  %s1 = inlined_call_operand.hbm [shape: f32[2,1024], index: 1, kind: output, shape index: {}]
  %s2 = sld [smem:[#allocation0]]
  $region2: #{tpu_custom_call.1} parent=0
    _
  %s4 = ssub.s32 1, %s2
  %s5 = scalar_select 0, %s4, %s2
  %s7 = sshll.u32 1, 14
  %s8 = sxor.u32 4294967295, %s7
  %s10 = sshll.u32 %s0, 4
  %s11 = int_to_ptr.hbm [resolvable:$true] %s10
  %s12 = sshll.u32 %s1, 4
  %s13 = int_to_ptr.hbm [resolvable:$true] %s12
  %16 = dma.general %s11, 256, %s13, [#allocation2], [#allocation3], [#allocation4], 0, 0
  %s17 = smul.u32 2, 1
  %s18 = smul.u32 %s17, 8
  %s19 = sshll.u32 %s18, 4
  %20 = dma.done [#allocation2], %s19
  %21 = vsyncmov [#allocation2]
  %s22 = vpop.sfrf %21
  %p23 = scmp.eq.s32.totalorder %s22, 0
  %p24 = pneg %p23
  %26 = shalt.err (%p24)

</llo_original>
